<compile_context>
chip_gen: v7x
topology: tpu7x:2x2x1
jax: 0.10.0
libtpu: 0.0.40
codegen_flags: <defaults>
</compile_context>

<pallas_src>
import functools

import jax
import jax.numpy as jnp
from jax import lax
from jax.experimental import pallas as pl
from jax.experimental.pallas import tpu as pltpu


# ---------------------------------------------------------------------------
# Fused kernel (batch on lanes):
#   h^T = sum_{l,i} w1e[(l,i)] @ (tile_n(u_{l,i}) * v_l)   -> (H, BB)  on MXU+VPU
#   LayerNorm over H (sublane axis) -> ReLU -> w2^T @ h^T  -> (O, BB)
# ---------------------------------------------------------------------------
def fused_invariant_head_kernel(ut_ref, vt_ref, w1e_ref, b1_ref, g_ref, beta_ref,
                                w2t_ref, b2t_ref, o_ref, *, L, n, r):
    # ut_ref, vt_ref : (L*n*r, BB)   activations, batch on lanes
    # w1e_ref        : (L*n, H, n*r) expanded linear1 weight (VMEM-resident)
    # b1/g/beta      : (H, 1)
    # w2t_ref        : (O, H)
    # b2t_ref        : (O, 1)
    # o_ref          : (O, BB)
    BB = ut_ref.shape[-1]
    H = w2t_ref.shape[-1]

    acc = jnp.zeros((H, BB), jnp.float32)
    for l in range(L):
        for i in range(n):
            # Per-iteration ref slices keep live ranges short (data already in VMEM).
            ui = ut_ref[(l * n + i) * r:(l * n + i + 1) * r, :]      # (r, BB)
            vl = vt_ref[l * n * r:(l + 1) * n * r, :]                # (n*r, BB)
            p = jnp.tile(ui, (n, 1)) * vl                            # (n*r, BB), lane-dense VPU
            acc = acc + jnp.dot(w1e_ref[l * n + i], p,               # (H, n*r) @ (n*r, BB)
                                preferred_element_type=jnp.float32)

    h = acc + b1_ref[...]                                            # (H, BB) + (H, 1)

    # LayerNorm over the hidden (sublane) axis, per batch lane.  eps = 1e-5 (PyTorch default).
    mean = jnp.mean(h, axis=0, keepdims=True)                        # (1, BB)
    var = jnp.mean(jnp.square(h - mean), axis=0, keepdims=True)      # (1, BB)
    hn = (h - mean) * lax.rsqrt(var + 1e-5)
    hn = hn * g_ref[...] + beta_ref[...]
    hr = jnp.maximum(hn, 0.0)

    out = jnp.dot(w2t_ref[...], hr, preferred_element_type=jnp.float32) + b2t_ref[...]
    o_ref[...] = out.astype(o_ref.dtype)                             # (O, BB) unmasked store


def _pick_batch_block(B, max_block=512):
    """Lane block over the batch: multiple of 128, capped, >= 2 grid steps when possible."""
    if B <= 128:
        return 128
    half = pl.cdiv(B, 2)
    bb = pl.cdiv(half, 128) * 128
    return min(max_block, bb)


# ---------------------------------------------------------------------------
# Wrapper
# ---------------------------------------------------------------------------
def invariant_head_forward(uvs, params, *, n, n_input_layers, max_batch_block=512):
    w1, b1, gamma, beta, w2, b2 = (
        params["w1"], params["b1"], params["gamma"],
        params["beta"], params["w2"], params["b2"],
    )
    B = uvs.shape[0]
    L = n_input_layers
    r = uvs.shape[-1]
    T = L * n * n
    H = w1.shape[1]
    O = w2.shape[1]

    BB = _pick_batch_block(B, max_batch_block)
    num_blocks = pl.cdiv(B, BB)
    Bp = num_blocks * BB          # output padded to full blocks; inputs are NOT padded

    # Batch-on-lanes activation layout: (L*n*r, B).  One XLA transpose copy, no jnp.pad.
    u, v = jnp.split(uvs, 2, axis=1)                                  # (B, L, n, r) each
    Ut = jnp.transpose(u, (1, 2, 3, 0)).reshape(L * n * r, B).astype(jnp.float32)
    Vt = jnp.transpose(v, (1, 2, 3, 0)).reshape(L * n * r, B).astype(jnp.float32)

    # Expand w1 so Stage A's rank-r reduction folds into the MXU matmul:
    #   w1e[(l,i), h, j*r + r'] = w1[l*n^2 + i*n + j, h]
    w1e = jnp.transpose(w1.reshape(L, n, n, H), (0, 1, 3, 2))         # (L, n, H, n)
    w1e = jnp.repeat(w1e, r, axis=-1).reshape(L * n, H, n * r)        # (L*n, H, n*r)

    b1t = b1.reshape(H, 1)
    gt = gamma.reshape(H, 1)
    bt = beta.reshape(H, 1)
    w2t = jnp.transpose(w2)                                           # (O, H)
    b2t = b2.reshape(O, 1)

    kernel = functools.partial(fused_invariant_head_kernel, L=L, n=n, r=r)
    outT = pl.pallas_call(
        kernel,
        out_shape=jax.ShapeDtypeStruct((O, Bp), jnp.float32),
        grid=(num_blocks,),
        in_specs=[
            pl.BlockSpec((L * n * r, BB), lambda b: (0, b)),          # u (batch lanes)
            pl.BlockSpec((L * n * r, BB), lambda b: (0, b)),          # v (batch lanes)
            pl.BlockSpec((L * n, H, n * r), lambda b: (0, 0, 0)),     # w1e: constant map
            pl.BlockSpec((H, 1), lambda b: (0, 0)),                   #   -> weights stay
            pl.BlockSpec((H, 1), lambda b: (0, 0)),                   #      VMEM-resident
            pl.BlockSpec((H, 1), lambda b: (0, 0)),
            pl.BlockSpec((O, H), lambda b: (0, 0)),
            pl.BlockSpec((O, 1), lambda b: (0, 0)),
        ],
        out_specs=pl.BlockSpec((O, BB), lambda b: (0, b)),
        compiler_params=pltpu.CompilerParams(
            dimension_semantics=("parallel",)),                       # megacore on v7x
        cost_estimate=pl.CostEstimate(
            flops=2 * B * (L * n * n * r + T * H + H * O),
            transcendentals=B,
            bytes_accessed=B * (2 * L * n * r + O) * 4
                           + (L * n * H * n * r + H * O + 3 * H + O) * 4),
    )(Ut, Vt, w1e, b1t, gt, bt, w2t, b2t)

    return jnp.transpose(outT[:, :B])                                 # (B, O)


# ---------------------------------------------------------------------------
# Pure-JAX reference (mirrors the PyTorch forward exactly)
# ---------------------------------------------------------------------------
def invariant_head_reference(uvs, params):
    u, v = jnp.split(uvs, 2, axis=1)
    prods = jnp.einsum("blnr,blmr->blnm", u, v)          # vmap_bmm(u, v.swapaxes(-1,-2))
    x = prods.reshape(uvs.shape[0], -1)
    h = x @ params["w1"] + params["b1"]
    mean = h.mean(-1, keepdims=True)
    var = ((h - mean) ** 2).mean(-1, keepdims=True)
    hn = (h - mean) / jnp.sqrt(var + 1e-5) * params["gamma"] + params["beta"]
    hr = jnp.maximum(hn, 0.0)
    return hr @ params["w2"] + params["b2"]


if __name__ == "__main__":
    # Small shapes consistent with the module.
    n = 4
    n_input_layers = 2
    hidden_dim = 32
    out_dim = 8
    rank = 8
    total_length = n * n * n_input_layers   # 32

    key = jax.random.PRNGKey(0)
    k_uvs, k_w1, k_b1, k_g, k_be, k_w2, k_b2, k_uvs2, k_uvs3 = jax.random.split(key, 9)

    params = {
        "w1": jax.random.normal(k_w1, (total_length, hidden_dim), jnp.float32)
              * (2.0 / total_length) ** 0.5,
        "b1": jax.random.normal(k_b1, (1, hidden_dim), jnp.float32) * 0.01,
        "gamma": 1.0 + 0.1 * jax.random.normal(k_g, (1, hidden_dim), jnp.float32),
        "beta": 0.1 * jax.random.normal(k_be, (1, hidden_dim), jnp.float32),
        "w2": jax.random.normal(k_w2, (hidden_dim, out_dim), jnp.float32)
              * (2.0 / hidden_dim) ** 0.5,
        "b2": jax.random.normal(k_b2, (1, out_dim), jnp.float32) * 0.01,
    }

    def check(B, k):
        uvs = jax.random.normal(k, (B, 2 * n_input_layers, n, rank), jnp.float32)
        out = invariant_head_forward(uvs, params, n=n, n_input_layers=n_input_layers)
        out = jax.block_until_ready(out)
        ref = invariant_head_reference(uvs, params)
        assert out.shape == (B, out_dim)
        assert jnp.allclose(out, ref, atol=2e-3, rtol=2e-3), f"mismatch vs reference (B={B})"

    check(2, k_uvs)      # tiny batch, single partial block
    check(10, k_uvs2)    # partial block, B not multiple of 8
    check(260, k_uvs3)   # multi-step grid (2 blocks), partial tail block

    print("KERNEL_OK")
</pallas_src>

<mosaic_0001>
module attributes {stable_mosaic.version = 11 : i64} {
  func.func @fused_invariant_head_kernel(%arg0: i32, %arg1: memref<64x128xf32, #tpu.memory_space<vmem>>, %arg2: memref<64x128xf32, #tpu.memory_space<vmem>>, %arg3: memref<8x32x32xf32, #tpu.memory_space<vmem>>, %arg4: memref<32x1xf32, #tpu.memory_space<vmem>>, %arg5: memref<32x1xf32, #tpu.memory_space<vmem>>, %arg6: memref<32x1xf32, #tpu.memory_space<vmem>>, %arg7: memref<8x32xf32, #tpu.memory_space<vmem>>, %arg8: memref<8x1xf32, #tpu.memory_space<vmem>>, %arg9: memref<8x128xf32, #tpu.memory_space<vmem>>) attributes {dimension_semantics = [#tpu.dimension_semantics<parallel>], iteration_bounds = array<i64: 1>, scalar_prefetch = 0 : i64, scratch_operands = 0 : i64, tpu.core_type = #tpu.core_type<tc>, window_params = [{transform_indices = @transform_0, window_bounds = array<i64: 64, 128>}, {transform_indices = @transform_1, window_bounds = array<i64: 64, 128>}, {pipeline_mode = #tpu.pipeline_mode<synchronous>, transform_indices = @transform_2, window_bounds = array<i64: 8, 32, 32>}, {pipeline_mode = #tpu.pipeline_mode<synchronous>, transform_indices = @transform_3, window_bounds = array<i64: 32, 1>}, {pipeline_mode = #tpu.pipeline_mode<synchronous>, transform_indices = @transform_4, window_bounds = array<i64: 32, 1>}, {pipeline_mode = #tpu.pipeline_mode<synchronous>, transform_indices = @transform_5, window_bounds = array<i64: 32, 1>}, {pipeline_mode = #tpu.pipeline_mode<synchronous>, transform_indices = @transform_6, window_bounds = array<i64: 8, 32>}, {pipeline_mode = #tpu.pipeline_mode<synchronous>, transform_indices = @transform_7, window_bounds = array<i64: 8, 1>}, {transform_indices = @transform_8, window_bounds = array<i64: 8, 128>}]} {
    %cst = arith.constant 0.000000e+00 : f32
    %0 = vector.broadcast %cst : f32 to vector<32x128xf32>
    %c0 = arith.constant 0 : index
    %c0_0 = arith.constant 0 : index
    %1 = vector.load %arg1[%c0, %c0_0] : memref<64x128xf32, #tpu.memory_space<vmem>>, vector<8x128xf32>
    %c0_1 = arith.constant 0 : index
    %c0_2 = arith.constant 0 : index
    %2 = vector.load %arg2[%c0_1, %c0_2] : memref<64x128xf32, #tpu.memory_space<vmem>>, vector<32x128xf32>
    %3 = tpu.concatenate %1, %1, %1, %1 in 0 : vector<8x128xf32>, vector<8x128xf32>, vector<8x128xf32>, vector<8x128xf32> -> vector<32x128xf32>
    %4 = arith.mulf %3, %2 : vector<32x128xf32>
    %c0_3 = arith.constant 0 : index
    %c0_4 = arith.constant 0 : index
    %c0_5 = arith.constant 0 : index
    %5 = vector.load %arg3[%c0_3, %c0_4, %c0_5] : memref<8x32x32xf32, #tpu.memory_space<vmem>>, vector<1x32x32xf32>
    %6 = vector.shape_cast %5 : vector<1x32x32xf32> to vector<32x32xf32>
    %cst_6 = arith.constant dense<0.000000e+00> : vector<32x128xf32>
    %7 = tpu.matmul %6, %4, %cst_6 {dimension_numbers = #tpu.dot_dimension_numbers<[1], [0], [0], [1], [0, 0, 1, 1], [], []>} : vector<32x32xf32>, vector<32x128xf32>, vector<32x128xf32> -> vector<32x128xf32>
    %8 = arith.addf %0, %7 : vector<32x128xf32>
    %c8 = arith.constant 8 : index
    %c0_7 = arith.constant 0 : index
    %9 = vector.load %arg1[%c8, %c0_7] : memref<64x128xf32, #tpu.memory_space<vmem>>, vector<8x128xf32>
    %c0_8 = arith.constant 0 : index
    %c0_9 = arith.constant 0 : index
    %10 = vector.load %arg2[%c0_8, %c0_9] : memref<64x128xf32, #tpu.memory_space<vmem>>, vector<32x128xf32>
    %11 = tpu.concatenate %9, %9, %9, %9 in 0 : vector<8x128xf32>, vector<8x128xf32>, vector<8x128xf32>, vector<8x128xf32> -> vector<32x128xf32>
    %12 = arith.mulf %11, %10 : vector<32x128xf32>
    %c1 = arith.constant 1 : index
    %c0_10 = arith.constant 0 : index
    %c0_11 = arith.constant 0 : index
    %13 = vector.load %arg3[%c1, %c0_10, %c0_11] : memref<8x32x32xf32, #tpu.memory_space<vmem>>, vector<1x32x32xf32>
    %14 = vector.shape_cast %13 : vector<1x32x32xf32> to vector<32x32xf32>
    %cst_12 = arith.constant dense<0.000000e+00> : vector<32x128xf32>
    %15 = tpu.matmul %14, %12, %cst_12 {dimension_numbers = #tpu.dot_dimension_numbers<[1], [0], [0], [1], [0, 0, 1, 1], [], []>} : vector<32x32xf32>, vector<32x128xf32>, vector<32x128xf32> -> vector<32x128xf32>
    %16 = arith.addf %8, %15 : vector<32x128xf32>
    %c16 = arith.constant 16 : index
    %c0_13 = arith.constant 0 : index
    %17 = vector.load %arg1[%c16, %c0_13] : memref<64x128xf32, #tpu.memory_space<vmem>>, vector<8x128xf32>
    %c0_14 = arith.constant 0 : index
    %c0_15 = arith.constant 0 : index
    %18 = vector.load %arg2[%c0_14, %c0_15] : memref<64x128xf32, #tpu.memory_space<vmem>>, vector<32x128xf32>
    %19 = tpu.concatenate %17, %17, %17, %17 in 0 : vector<8x128xf32>, vector<8x128xf32>, vector<8x128xf32>, vector<8x128xf32> -> vector<32x128xf32>
    %20 = arith.mulf %19, %18 : vector<32x128xf32>
    %c2 = arith.constant 2 : index
    %c0_16 = arith.constant 0 : index
    %c0_17 = arith.constant 0 : index
    %21 = vector.load %arg3[%c2, %c0_16, %c0_17] : memref<8x32x32xf32, #tpu.memory_space<vmem>>, vector<1x32x32xf32>
    %22 = vector.shape_cast %21 : vector<1x32x32xf32> to vector<32x32xf32>
    %cst_18 = arith.constant dense<0.000000e+00> : vector<32x128xf32>
    %23 = tpu.matmul %22, %20, %cst_18 {dimension_numbers = #tpu.dot_dimension_numbers<[1], [0], [0], [1], [0, 0, 1, 1], [], []>} : vector<32x32xf32>, vector<32x128xf32>, vector<32x128xf32> -> vector<32x128xf32>
    %24 = arith.addf %16, %23 : vector<32x128xf32>
    %c24 = arith.constant 24 : index
    %c0_19 = arith.constant 0 : index
    %25 = vector.load %arg1[%c24, %c0_19] : memref<64x128xf32, #tpu.memory_space<vmem>>, vector<8x128xf32>
    %c0_20 = arith.constant 0 : index
    %c0_21 = arith.constant 0 : index
    %26 = vector.load %arg2[%c0_20, %c0_21] : memref<64x128xf32, #tpu.memory_space<vmem>>, vector<32x128xf32>
    %27 = tpu.concatenate %25, %25, %25, %25 in 0 : vector<8x128xf32>, vector<8x128xf32>, vector<8x128xf32>, vector<8x128xf32> -> vector<32x128xf32>
    %28 = arith.mulf %27, %26 : vector<32x128xf32>
    %c3 = arith.constant 3 : index
    %c0_22 = arith.constant 0 : index
    %c0_23 = arith.constant 0 : index
    %29 = vector.load %arg3[%c3, %c0_22, %c0_23] : memref<8x32x32xf32, #tpu.memory_space<vmem>>, vector<1x32x32xf32>
    %30 = vector.shape_cast %29 : vector<1x32x32xf32> to vector<32x32xf32>
    %cst_24 = arith.constant dense<0.000000e+00> : vector<32x128xf32>
    %31 = tpu.matmul %30, %28, %cst_24 {dimension_numbers = #tpu.dot_dimension_numbers<[1], [0], [0], [1], [0, 0, 1, 1], [], []>} : vector<32x32xf32>, vector<32x128xf32>, vector<32x128xf32> -> vector<32x128xf32>
    %32 = arith.addf %24, %31 : vector<32x128xf32>
    %c32 = arith.constant 32 : index
    %c0_25 = arith.constant 0 : index
    %33 = vector.load %arg1[%c32, %c0_25] : memref<64x128xf32, #tpu.memory_space<vmem>>, vector<8x128xf32>
    %c32_26 = arith.constant 32 : index
    %c0_27 = arith.constant 0 : index
    %34 = vector.load %arg2[%c32_26, %c0_27] : memref<64x128xf32, #tpu.memory_space<vmem>>, vector<32x128xf32>
    %35 = tpu.concatenate %33, %33, %33, %33 in 0 : vector<8x128xf32>, vector<8x128xf32>, vector<8x128xf32>, vector<8x128xf32> -> vector<32x128xf32>
    %36 = arith.mulf %35, %34 : vector<32x128xf32>
    %c4 = arith.constant 4 : index
    %c0_28 = arith.constant 0 : index
    %c0_29 = arith.constant 0 : index
    %37 = vector.load %arg3[%c4, %c0_28, %c0_29] : memref<8x32x32xf32, #tpu.memory_space<vmem>>, vector<1x32x32xf32>
    %38 = vector.shape_cast %37 : vector<1x32x32xf32> to vector<32x32xf32>
    %cst_30 = arith.constant dense<0.000000e+00> : vector<32x128xf32>
    %39 = tpu.matmul %38, %36, %cst_30 {dimension_numbers = #tpu.dot_dimension_numbers<[1], [0], [0], [1], [0, 0, 1, 1], [], []>} : vector<32x32xf32>, vector<32x128xf32>, vector<32x128xf32> -> vector<32x128xf32>
    %40 = arith.addf %32, %39 : vector<32x128xf32>
    %c40 = arith.constant 40 : index
    %c0_31 = arith.constant 0 : index
    %41 = vector.load %arg1[%c40, %c0_31] : memref<64x128xf32, #tpu.memory_space<vmem>>, vector<8x128xf32>
    %c32_32 = arith.constant 32 : index
    %c0_33 = arith.constant 0 : index
    %42 = vector.load %arg2[%c32_32, %c0_33] : memref<64x128xf32, #tpu.memory_space<vmem>>, vector<32x128xf32>
    %43 = tpu.concatenate %41, %41, %41, %41 in 0 : vector<8x128xf32>, vector<8x128xf32>, vector<8x128xf32>, vector<8x128xf32> -> vector<32x128xf32>
    %44 = arith.mulf %43, %42 : vector<32x128xf32>
    %c5 = arith.constant 5 : index
    %c0_34 = arith.constant 0 : index
    %c0_35 = arith.constant 0 : index
    %45 = vector.load %arg3[%c5, %c0_34, %c0_35] : memref<8x32x32xf32, #tpu.memory_space<vmem>>, vector<1x32x32xf32>
    %46 = vector.shape_cast %45 : vector<1x32x32xf32> to vector<32x32xf32>
    %cst_36 = arith.constant dense<0.000000e+00> : vector<32x128xf32>
    %47 = tpu.matmul %46, %44, %cst_36 {dimension_numbers = #tpu.dot_dimension_numbers<[1], [0], [0], [1], [0, 0, 1, 1], [], []>} : vector<32x32xf32>, vector<32x128xf32>, vector<32x128xf32> -> vector<32x128xf32>
    %48 = arith.addf %40, %47 : vector<32x128xf32>
    %c48 = arith.constant 48 : index
    %c0_37 = arith.constant 0 : index
    %49 = vector.load %arg1[%c48, %c0_37] : memref<64x128xf32, #tpu.memory_space<vmem>>, vector<8x128xf32>
    %c32_38 = arith.constant 32 : index
    %c0_39 = arith.constant 0 : index
    %50 = vector.load %arg2[%c32_38, %c0_39] : memref<64x128xf32, #tpu.memory_space<vmem>>, vector<32x128xf32>
    %51 = tpu.concatenate %49, %49, %49, %49 in 0 : vector<8x128xf32>, vector<8x128xf32>, vector<8x128xf32>, vector<8x128xf32> -> vector<32x128xf32>
    %52 = arith.mulf %51, %50 : vector<32x128xf32>
    %c6 = arith.constant 6 : index
    %c0_40 = arith.constant 0 : index
    %c0_41 = arith.constant 0 : index
    %53 = vector.load %arg3[%c6, %c0_40, %c0_41] : memref<8x32x32xf32, #tpu.memory_space<vmem>>, vector<1x32x32xf32>
    %54 = vector.shape_cast %53 : vector<1x32x32xf32> to vector<32x32xf32>
    %cst_42 = arith.constant dense<0.000000e+00> : vector<32x128xf32>
    %55 = tpu.matmul %54, %52, %cst_42 {dimension_numbers = #tpu.dot_dimension_numbers<[1], [0], [0], [1], [0, 0, 1, 1], [], []>} : vector<32x32xf32>, vector<32x128xf32>, vector<32x128xf32> -> vector<32x128xf32>
    %56 = arith.addf %48, %55 : vector<32x128xf32>
    %c56 = arith.constant 56 : index
    %c0_43 = arith.constant 0 : index
    %57 = vector.load %arg1[%c56, %c0_43] : memref<64x128xf32, #tpu.memory_space<vmem>>, vector<8x128xf32>
    %c32_44 = arith.constant 32 : index
    %c0_45 = arith.constant 0 : index
    %58 = vector.load %arg2[%c32_44, %c0_45] : memref<64x128xf32, #tpu.memory_space<vmem>>, vector<32x128xf32>
    %59 = tpu.concatenate %57, %57, %57, %57 in 0 : vector<8x128xf32>, vector<8x128xf32>, vector<8x128xf32>, vector<8x128xf32> -> vector<32x128xf32>
    %60 = arith.mulf %59, %58 : vector<32x128xf32>
    %c7 = arith.constant 7 : index
    %c0_46 = arith.constant 0 : index
    %c0_47 = arith.constant 0 : index
    %61 = vector.load %arg3[%c7, %c0_46, %c0_47] : memref<8x32x32xf32, #tpu.memory_space<vmem>>, vector<1x32x32xf32>
    %62 = vector.shape_cast %61 : vector<1x32x32xf32> to vector<32x32xf32>
    %cst_48 = arith.constant dense<0.000000e+00> : vector<32x128xf32>
    %63 = tpu.matmul %62, %60, %cst_48 {dimension_numbers = #tpu.dot_dimension_numbers<[1], [0], [0], [1], [0, 0, 1, 1], [], []>} : vector<32x32xf32>, vector<32x128xf32>, vector<32x128xf32> -> vector<32x128xf32>
    %64 = arith.addf %56, %63 : vector<32x128xf32>
    %c0_49 = arith.constant 0 : index
    %c0_50 = arith.constant 0 : index
    %65 = vector.load %arg4[%c0_49, %c0_50] : memref<32x1xf32, #tpu.memory_space<vmem>>, vector<32x1xf32>
    %66 = vector.broadcast %65 : vector<32x1xf32> to vector<32x128xf32>
    %67 = arith.addf %64, %66 : vector<32x128xf32>
    %cst_51 = arith.constant dense<0.000000e+00> : vector<128xf32>
    %68 = vector.multi_reduction <add>, %67, %cst_51 [0] : vector<32x128xf32> to vector<128xf32>
    %69 = vector.shape_cast %68 : vector<128xf32> to vector<1x128xf32>
    %cst_52 = arith.constant 3.200000e+01 : f32
    %70 = vector.broadcast %cst_52 : f32 to vector<1x128xf32>
    %71 = arith.divf %69, %70 : vector<1x128xf32>
    %72 = vector.broadcast %71 : vector<1x128xf32> to vector<32x128xf32>
    %73 = arith.subf %67, %72 : vector<32x128xf32>
    %74 = arith.mulf %73, %73 : vector<32x128xf32>
    %cst_53 = arith.constant dense<0.000000e+00> : vector<128xf32>
    %75 = vector.multi_reduction <add>, %74, %cst_53 [0] : vector<32x128xf32> to vector<128xf32>
    %76 = vector.shape_cast %75 : vector<128xf32> to vector<1x128xf32>
    %cst_54 = arith.constant 3.200000e+01 : f32
    %77 = vector.broadcast %cst_54 : f32 to vector<1x128xf32>
    %78 = arith.divf %76, %77 : vector<1x128xf32>
    %79 = vector.broadcast %71 : vector<1x128xf32> to vector<32x128xf32>
    %80 = arith.subf %67, %79 : vector<32x128xf32>
    %cst_55 = arith.constant 9.99999974E-6 : f32
    %81 = vector.broadcast %cst_55 : f32 to vector<1x128xf32>
    %82 = arith.addf %78, %81 : vector<1x128xf32>
    %83 = math.rsqrt %82 : vector<1x128xf32>
    %84 = vector.broadcast %83 : vector<1x128xf32> to vector<32x128xf32>
    %85 = arith.mulf %80, %84 : vector<32x128xf32>
    %c0_56 = arith.constant 0 : index
    %c0_57 = arith.constant 0 : index
    %86 = vector.load %arg5[%c0_56, %c0_57] : memref<32x1xf32, #tpu.memory_space<vmem>>, vector<32x1xf32>
    %87 = vector.broadcast %86 : vector<32x1xf32> to vector<32x128xf32>
    %88 = arith.mulf %85, %87 : vector<32x128xf32>
    %c0_58 = arith.constant 0 : index
    %c0_59 = arith.constant 0 : index
    %89 = vector.load %arg6[%c0_58, %c0_59] : memref<32x1xf32, #tpu.memory_space<vmem>>, vector<32x1xf32>
    %90 = vector.broadcast %89 : vector<32x1xf32> to vector<32x128xf32>
    %91 = arith.addf %88, %90 : vector<32x128xf32>
    %cst_60 = arith.constant 0.000000e+00 : f32
    %92 = vector.broadcast %cst_60 : f32 to vector<32x128xf32>
    %93 = arith.maximumf %91, %92 : vector<32x128xf32>
    %c0_61 = arith.constant 0 : index
    %c0_62 = arith.constant 0 : index
    %94 = vector.load %arg7[%c0_61, %c0_62] : memref<8x32xf32, #tpu.memory_space<vmem>>, vector<8x32xf32>
    %cst_63 = arith.constant dense<0.000000e+00> : vector<8x128xf32>
    %95 = tpu.matmul %94, %93, %cst_63 {dimension_numbers = #tpu.dot_dimension_numbers<[1], [0], [0], [1], [0, 0, 1, 1], [], []>} : vector<8x32xf32>, vector<32x128xf32>, vector<8x128xf32> -> vector<8x128xf32>
    %c0_64 = arith.constant 0 : index
    %c0_65 = arith.constant 0 : index
    %96 = vector.load %arg8[%c0_64, %c0_65] : memref<8x1xf32, #tpu.memory_space<vmem>>, vector<8x1xf32>
    %97 = vector.broadcast %96 : vector<8x1xf32> to vector<8x128xf32>
    %98 = arith.addf %95, %97 : vector<8x128xf32>
    %c0_66 = arith.constant 0 : index
    %c0_67 = arith.constant 0 : index
    %99 = vector.load %arg9[%c0_66, %c0_67] : memref<8x128xf32, #tpu.memory_space<vmem>>, vector<8x128xf32>
    tpu.vector_store %arg9[%c0_66, %c0_67], %98 {strides = array<i32>} : memref<8x128xf32, #tpu.memory_space<vmem>>, vector<8x128xf32>,
    return
  }
  func.func @transform_0(%arg0: i32) -> (i32, i32) {
    %c0_i32 = arith.constant 0 : i32
    %c0_i32_0 = arith.constant 0 : i32
    return %c0_i32, %arg0 : i32, i32
  }
  func.func @transform_1(%arg0: i32) -> (i32, i32) {
    %c0_i32 = arith.constant 0 : i32
    %c0_i32_0 = arith.constant 0 : i32
    return %c0_i32, %arg0 : i32, i32
  }
  func.func @transform_2(%arg0: i32) -> (i32, i32, i32) {
    %c0_i32 = arith.constant 0 : i32
    %c0_i32_0 = arith.constant 0 : i32
    %c0_i32_1 = arith.constant 0 : i32
    %c0_i32_2 = arith.constant 0 : i32
    return %c0_i32, %c0_i32_0, %c0_i32_1 : i32, i32, i32
  }
  func.func @transform_3(%arg0: i32) -> (i32, i32) {
    %c0_i32 = arith.constant 0 : i32
    %c0_i32_0 = arith.constant 0 : i32
    %c0_i32_1 = arith.constant 0 : i32
    return %c0_i32, %c0_i32_0 : i32, i32
  }
  func.func @transform_4(%arg0: i32) -> (i32, i32) {
    %c0_i32 = arith.constant 0 : i32
    %c0_i32_0 = arith.constant 0 : i32
    %c0_i32_1 = arith.constant 0 : i32
    return %c0_i32, %c0_i32_0 : i32, i32
  }
  func.func @transform_5(%arg0: i32) -> (i32, i32) {
    %c0_i32 = arith.constant 0 : i32
    %c0_i32_0 = arith.constant 0 : i32
    %c0_i32_1 = arith.constant 0 : i32
    return %c0_i32, %c0_i32_0 : i32, i32
  }
  func.func @transform_6(%arg0: i32) -> (i32, i32) {
    %c0_i32 = arith.constant 0 : i32
    %c0_i32_0 = arith.constant 0 : i32
    %c0_i32_1 = arith.constant 0 : i32
    return %c0_i32, %c0_i32_0 : i32, i32
  }
  func.func @transform_7(%arg0: i32) -> (i32, i32) {
    %c0_i32 = arith.constant 0 : i32
    %c0_i32_0 = arith.constant 0 : i32
    %c0_i32_1 = arith.constant 0 : i32
    return %c0_i32, %c0_i32_0 : i32, i32
  }
  func.func @transform_8(%arg0: i32) -> (i32, i32) {
    %c0_i32 = arith.constant 0 : i32
    %c0_i32_0 = arith.constant 0 : i32
    return %c0_i32, %arg0 : i32, i32
  }
}

</mosaic_0001>

<llo_original>
// kernel: tpu_custom_call.1
$region0: #{tpu_custom_call.1}
  #allocation0 [shape = 'u32[]', space=smem, size = 0x4, offset = 0x4, fixed_abs, tag = 'smem constant byte address 0x4 - core index']
  #allocation1 [shape = 'u32[144,128]{1,0:T(1,128)}', space=vmem, size = 0x12000, scoped, tag = 'internal scratch']
  %s0 = inlined_call_operand.vmem [shape: f32[64,2], index: 0, kind: input, shape index: {}]
  %s1 = inlined_call_operand.vmem [shape: f32[64,2], index: 1, kind: input, shape index: {}]
  %s2 = inlined_call_operand.hbm [shape: f32[8,32,32], index: 2, kind: input, shape index: {}]
  %s3 = inlined_call_operand.vmem [shape: f32[32,1], index: 3, kind: input, shape index: {}]
  %s4 = inlined_call_operand.vmem [shape: f32[32,1], index: 4, kind: input, shape index: {}]
  %s5 = inlined_call_operand.vmem [shape: f32[32,1], index: 5, kind: input, shape index: {}]
  %s6 = inlined_call_operand.vmem [shape: f32[8,32], index: 6, kind: input, shape index: {}]
  %s7 = inlined_call_operand.vmem [shape: f32[8,1], index: 7, kind: input, shape index: {}]
  %s8 = inlined_call_operand.hbm [shape: f32[8,128], index: 8, kind: output, shape index: {}]
  %s9 = sld [smem:[#allocation0]]
  $region46: #{tpu_custom_call.1} parent=0
    _
  %s11 = ssub.s32 1, %s9
  %s12 = scalar_select 0, %s11, %s9
  $region1: #{tpu_custom_call.1} parent=0
    #allocation2 [shape = 'u8[131072]{0}', space=vmem, size = 0x20000, scoped, tag = 'input window, operand 2, single buffered']
    #allocation3 [shape = 's32[1]{0}', space=sflag, size = 0x4, scoped, tag = 'scoped memory for tpu_custom_call.1']
    #allocation4 [shape = 's32[1]{0}', space=sflag, size = 0x4, scoped, tag = 'scoped memory for tpu_custom_call.1']
    #allocation5 [shape = 'u8[4096]{0}', space=vmem, size = 0x1000, scoped, tag = 'output window, operand 0, single buffered']
    %13 = vsyncpa [#allocation3], 0
    %14 = vsyncpa [#allocation4], 0
    // Predicated region
    $region2: #{tpu_custom_call.1} parent=1 // pred_check
      _
    $region3: #{tpu_custom_call.1} parent=1 // pred_check_branch
      %16 = sbr.rel (0) target = $region5
    $region4: #{tpu_custom_call.1} parent=1 // pred_region
      _
    $region5: #{tpu_custom_call.1} parent=1 // pred_fallthru
      _
    // Predicated region
    $region6: #{tpu_custom_call.1} parent=1 // pred_check
      _
    $region7: #{tpu_custom_call.1} parent=1 // pred_check_branch
      %18 = sbr.rel (0) target = $region9
    $region8: #{tpu_custom_call.1} parent=1 // pred_region
      _
    $region9: #{tpu_custom_call.1} parent=1 // pred_fallthru
      _
    // Predicated region
    $region10: #{tpu_custom_call.1} parent=1 // pred_check
      _
    $region11: #{tpu_custom_call.1} parent=1 // pred_check_branch
      %20 = sbr.rel (0) target = $region13
    $region12: #{tpu_custom_call.1} parent=1 // pred_region
      %s22 = ssub.s32 4096, 4096
      %23 = vsyncadd [#allocation3], %s22
      %s24 = sshll.u32 [#allocation2], 4
      %s25 = int_to_ptr.vmem [resolvable:$true] %s24
      %30 = dma.hbm_to_vmem [thread:$0]  %s2, 4096, %s25, [#allocation3], 128, 128, 8
    $region13: #{tpu_custom_call.1} parent=1 // pred_fallthru
      _
    // Predicated region
    $region14: #{tpu_custom_call.1} parent=1 // pred_check
      _
    $region15: #{tpu_custom_call.1} parent=1 // pred_check_branch
      %32 = sbr.rel (0) target = $region17
    $region16: #{tpu_custom_call.1} parent=1 // pred_region
      _
    $region17: #{tpu_custom_call.1} parent=1 // pred_fallthru
      _
    // Predicated region
    $region18: #{tpu_custom_call.1} parent=1 // pred_check
      _
    $region19: #{tpu_custom_call.1} parent=1 // pred_check_branch
      %34 = sbr.rel (0) target = $region21
    $region20: #{tpu_custom_call.1} parent=1 // pred_region
      _
    $region21: #{tpu_custom_call.1} parent=1 // pred_fallthru
      _
    // Predicated region
    $region22: #{tpu_custom_call.1} parent=1 // pred_check
      _
    $region23: #{tpu_custom_call.1} parent=1 // pred_check_branch
      %36 = sbr.rel (0) target = $region25
    $region24: #{tpu_custom_call.1} parent=1 // pred_region
      _
    $region25: #{tpu_custom_call.1} parent=1 // pred_fallthru
      _
    // Predicated region
    $region26: #{tpu_custom_call.1} parent=1 // pred_check
      _
    $region27: #{tpu_custom_call.1} parent=1 // pred_check_branch
      %38 = sbr.rel (0) target = $region29
    $region28: #{tpu_custom_call.1} parent=1 // pred_region
      _
    $region29: #{tpu_custom_call.1} parent=1 // pred_fallthru
      _
    // Predicated region
    $region30: #{tpu_custom_call.1} parent=1 // pred_check
      _
    $region31: #{tpu_custom_call.1} parent=1 // pred_check_branch
      %40 = sbr.rel (0) target = $region33
    $region32: #{tpu_custom_call.1} parent=1 // pred_region
      _
    $region33: #{tpu_custom_call.1} parent=1 // pred_fallthru
      _
    // Predicated region
    $region34: #{tpu_custom_call.1} parent=1 // pred_check
      _
    $region35: #{tpu_custom_call.1} parent=1 // pred_check_branch
      %42 = sbr.rel (0) target = $region37
    $region36: #{tpu_custom_call.1} parent=1 // pred_region
      %43 = dma.done [#allocation3], 4096
    $region37: #{tpu_custom_call.1} parent=1 // pred_fallthru
      _
    %v44 = vld [vmem:[%s0] sm:$0xff]
    %v45 = vld [vmem:[%s1] sm:$0xff]
    %v46 = vld [vmem:[%s1 + $0x8] sm:$0xff]
    %v47 = vld [vmem:[%s1 + $0x10] sm:$0xff]
    %v48 = vld [vmem:[%s1 + $0x18] sm:$0xff]
    %v49 = vmul.f32 %v44, %v45
    %v50 = vmul.f32 %v44, %v46
    %v51 = vmul.f32 %v44, %v47
    %v52 = vmul.f32 %v44, %v48
    %v53 = vld [vmem:[#allocation2] sm:$0xff]
    %v54 = vld [vmem:[#allocation2 + $0x8] sm:$0xff]
    %v55 = vld [vmem:[#allocation2 + $0x10] sm:$0xff]
    %v56 = vld [vmem:[#allocation2 + $0x18] sm:$0xff]
    %v57 = vld [vmem:[%s0 + $0x8] sm:$0xff]
    %v58 = vmul.f32 %v57, %v45
    %v59 = vmul.f32 %v57, %v46
    %v60 = vmul.f32 %v57, %v47
    %v61 = vmul.f32 %v57, %v48
    %s62 = scalar_lea.vmem [#allocation2], 32
    %v63 = vld [vmem:[%s62] sm:$0xff]
    %v64 = vld [vmem:[%s62 + $0x8] sm:$0xff]
    %v65 = vld [vmem:[%s62 + $0x10] sm:$0xff]
    %v66 = vld [vmem:[%s62 + $0x18] sm:$0xff]
    %vm67 = vcmask 261120
    %v69 = vsel %vm67, %v63, 0
    %v72 = vsel %vm67, %v64, 0
    %v75 = vsel %vm67, %v65, 0
    %v78 = vsel %vm67, %v66, 0
    %80 = vmatprep.subr.mxu0 0.0
    %81 = vmatpush1.msra.mxu0 %v58
    %82 = vmatprep.subr.mxu0 0.0
    %83 = vmatpush1.msra.mxu0 %v59
    %84 = vmatprep.subr.mxu0 0.0
    %85 = vmatpush1.msra.mxu0 %v60
    %86 = vmatprep.subr.mxu0 0.0
    %87 = vmatpush1.msra.mxu0 %v61
    %88 = vmatprep.subr.mxu0 0.0
    %89 = vmatpush1.msra.mxu0 0.0
    %90 = vmatprep.subr.mxu0 0.0
    %91 = vmatpush1.msra.mxu0 0.0
    %92 = vmatprep.subr.mxu0 0.0
    %93 = vmatpush1.msra.mxu0 0.0
    %94 = vmatprep.subr.mxu0 0.0
    %95 = vmatpush1.msra.mxu0 0.0
    %96 = vmatprep.subr.mxu0 0.0
    %97 = vmatpush1.msra.mxu0 0.0
    %98 = vmatprep.subr.mxu0 0.0
    %99 = vmatpush1.msra.mxu0 0.0
    %100 = vmatprep.subr.mxu0 0.0
    %101 = vmatpush1.msra.mxu0 0.0
    %102 = vmatprep.subr.mxu0 0.0
    %103 = vmatpush1.msra.mxu0 0.0
    %104 = vmatprep.subr.mxu0 0.0
    %105 = vmatpush1.msra.mxu0 0.0
    %106 = vmatprep.subr.mxu0 0.0
    %107 = vmatpush1.msra.mxu0 0.0
    %108 = vmatprep.subr.mxu0 0.0
    %109 = vmatpush1.msra.mxu0 0.0
    %110 = vmatprep.subr.mxu0 0.0
    %111 = vmatpush1.msra.mxu0 0.0
    %112 = vmatprep.subr.mxu0 0.0
    %113 = vmatpush1.msra.mxu0 0.0
    %114 = vmatprep.subr.mxu0 0.0
    %115 = vmatpush1.msra.mxu0 0.0
    %116 = vmatprep.subr.mxu0 0.0
    %117 = vmatpush1.msra.mxu0 0.0
    %118 = vmatprep.subr.mxu0 0.0
    %119 = vmatpush1.msra.mxu0 0.0
    %120 = vmatprep.subr.mxu0 0.0
    %121 = vmatpush1.msra.mxu0 0.0
    %122 = vmatprep.subr.mxu0 0.0
    %123 = vmatpush1.msra.mxu0 0.0
    %124 = vmatprep.subr.mxu0 0.0
    %125 = vmatpush1.msra.mxu0 0.0
    %126 = vmatprep.subr.mxu0 0.0
    %127 = vmatpush1.msra.mxu0 0.0
    %128 = vmatprep.subr.mxu0 0.0
    %129 = vmatpush1.msra.mxu0 0.0
    %130 = vmatprep.subr.mxu0 0.0
    %131 = vmatpush1.msra.mxu0 0.0
    %132 = vmatprep.subr.mxu0 0.0
    %133 = vmatpush1.msra.mxu0 0.0
    %134 = vmatprep.subr.mxu0 0.0
    %135 = vmatpush1.msra.mxu0 0.0
    %136 = vmatprep.subr.mxu0 0.0
    %137 = vmatpush1.msra.mxu0 0.0
    %138 = vmatprep.subr.mxu0 0.0
    %139 = vmatpush1.msra.mxu0 0.0
    %140 = vmatprep.subr.mxu0 0.0
    %141 = vmatpush1.msra.mxu0 0.0
    %142 = vmatprep.subr.mxu0 0.0
    %143 = vmatpush1.msra.mxu0 0.0
    %144 = vmatprep.mubr.f32.mxu0 0.0
    %145 = vmatmul.mubr.f32.gmra.mrb[0].mxu0 %v69
    %v146 = vpop.f32.mrb[0].mxu0
    %v147 = vadd.f32 0.0, %v146
    %v148 = vpop.f32.mrb[0].mxu0
    %149 = vmatprep.mubr.f32.mxu0 0.0
    %150 = vmatmul.mubr.f32.gmra.mrb[0].mxu0 %v72
    %v151 = vpop.f32.mrb[0].mxu0
    %v152 = vadd.f32 0.0, %v151
    %v153 = vpop.f32.mrb[0].mxu0
    %154 = vmatprep.mubr.f32.mxu0 0.0
    %155 = vmatmul.mubr.f32.gmra.mrb[0].mxu0 %v75
    %v156 = vpop.f32.mrb[0].mxu0
    %v157 = vadd.f32 0.0, %v156
    %v158 = vpop.f32.mrb[0].mxu0
    %159 = vmatprep.mubr.f32.mxu0 0.0
    %160 = vmatmul.mubr.f32.gmra.mrb[0].mxu0 %v78
    %v161 = vpop.f32.mrb[0].mxu0
    %v162 = vadd.f32 0.0, %v161
    %v163 = vpop.f32.mrb[0].mxu0
    %164 = vdwg.mxu0
    %v166 = vsel %vm67, %v53, 0
    %v169 = vsel %vm67, %v54, 0
    %v172 = vsel %vm67, %v55, 0
    %v175 = vsel %vm67, %v56, 0
    %177 = vmatprep.subr.mxu0 0.0
    %178 = vmatpush1.msra.mxu0 %v49
    %179 = vmatprep.subr.mxu0 0.0
    %180 = vmatpush1.msra.mxu0 %v50
    %181 = vmatprep.subr.mxu0 0.0
    %182 = vmatpush1.msra.mxu0 %v51
    %183 = vmatprep.subr.mxu0 0.0
    %184 = vmatpush1.msra.mxu0 %v52
    %185 = vmatprep.subr.mxu0 0.0
    %186 = vmatpush1.msra.mxu0 0.0
    %187 = vmatprep.subr.mxu0 0.0
    %188 = vmatpush1.msra.mxu0 0.0
    %189 = vmatprep.subr.mxu0 0.0
    %190 = vmatpush1.msra.mxu0 0.0
    %191 = vmatprep.subr.mxu0 0.0
    %192 = vmatpush1.msra.mxu0 0.0
    %193 = vmatprep.subr.mxu0 0.0
    %194 = vmatpush1.msra.mxu0 0.0
    %195 = vmatprep.subr.mxu0 0.0
    %196 = vmatpush1.msra.mxu0 0.0
    %197 = vmatprep.subr.mxu0 0.0
    %198 = vmatpush1.msra.mxu0 0.0
    %199 = vmatprep.subr.mxu0 0.0
    %200 = vmatpush1.msra.mxu0 0.0
    %201 = vmatprep.subr.mxu0 0.0
    %202 = vmatpush1.msra.mxu0 0.0
    %203 = vmatprep.subr.mxu0 0.0
    %204 = vmatpush1.msra.mxu0 0.0
    %205 = vmatprep.subr.mxu0 0.0
    %206 = vmatpush1.msra.mxu0 0.0
    %207 = vmatprep.subr.mxu0 0.0
    %208 = vmatpush1.msra.mxu0 0.0
    %209 = vmatprep.subr.mxu0 0.0
    %210 = vmatpush1.msra.mxu0 0.0
    %211 = vmatprep.subr.mxu0 0.0
    %212 = vmatpush1.msra.mxu0 0.0
    %213 = vmatprep.subr.mxu0 0.0
    %214 = vmatpush1.msra.mxu0 0.0
    %215 = vmatprep.subr.mxu0 0.0
    %216 = vmatpush1.msra.mxu0 0.0
    %217 = vmatprep.subr.mxu0 0.0
    %218 = vmatpush1.msra.mxu0 0.0
    %219 = vmatprep.subr.mxu0 0.0
    %220 = vmatpush1.msra.mxu0 0.0
    %221 = vmatprep.subr.mxu0 0.0
    %222 = vmatpush1.msra.mxu0 0.0
    %223 = vmatprep.subr.mxu0 0.0
    %224 = vmatpush1.msra.mxu0 0.0
    %225 = vmatprep.subr.mxu0 0.0
    %226 = vmatpush1.msra.mxu0 0.0
    %227 = vmatprep.subr.mxu0 0.0
    %228 = vmatpush1.msra.mxu0 0.0
    %229 = vmatprep.subr.mxu0 0.0
    %230 = vmatpush1.msra.mxu0 0.0
    %231 = vmatprep.subr.mxu0 0.0
    %232 = vmatpush1.msra.mxu0 0.0
    %233 = vmatprep.subr.mxu0 0.0
    %234 = vmatpush1.msra.mxu0 0.0
    %235 = vmatprep.subr.mxu0 0.0
    %236 = vmatpush1.msra.mxu0 0.0
    %237 = vmatprep.subr.mxu0 0.0
    %238 = vmatpush1.msra.mxu0 0.0
    %239 = vmatprep.subr.mxu0 0.0
    %240 = vmatpush1.msra.mxu0 0.0
    %241 = vmatprep.mubr.f32.mxu0 0.0
    %242 = vmatmul.mubr.f32.gmra.mrb[0].mxu0 %v166
    %v243 = vpop.f32.mrb[0].mxu0
    %v244 = vadd.f32 %v147, %v243
    %v245 = vpop.f32.mrb[0].mxu0
    %246 = vmatprep.mubr.f32.mxu0 0.0
    %247 = vmatmul.mubr.f32.gmra.mrb[0].mxu0 %v169
    %v248 = vpop.f32.mrb[0].mxu0
    %v249 = vadd.f32 %v152, %v248
    %v250 = vpop.f32.mrb[0].mxu0
    %251 = vmatprep.mubr.f32.mxu0 0.0
    %252 = vmatmul.mubr.f32.gmra.mrb[0].mxu0 %v172
    %v253 = vpop.f32.mrb[0].mxu0
    %v254 = vadd.f32 %v157, %v253
    %v255 = vpop.f32.mrb[0].mxu0
    %256 = vmatprep.mubr.f32.mxu0 0.0
    %257 = vmatmul.mubr.f32.gmra.mrb[0].mxu0 %v175
    %v258 = vpop.f32.mrb[0].mxu0
    %v259 = vadd.f32 %v162, %v258
    %v260 = vpop.f32.mrb[0].mxu0
    %261 = vdwg.mxu0
    %v262 = vld [vmem:[%s0 + $0x10] sm:$0xff]
    %v263 = vmul.f32 %v262, %v45
    %v264 = vmul.f32 %v262, %v46
    %v265 = vmul.f32 %v262, %v47
    %v266 = vmul.f32 %v262, %v48
    %s267 = scalar_lea.vmem [#allocation2], 64
    %v268 = vld [vmem:[%s267] sm:$0xff]
    %v269 = vld [vmem:[%s267 + $0x8] sm:$0xff]
    %v270 = vld [vmem:[%s267 + $0x10] sm:$0xff]
    %v271 = vld [vmem:[%s267 + $0x18] sm:$0xff]
    %v273 = vsel %vm67, %v268, 0
    %v276 = vsel %vm67, %v269, 0
    %v279 = vsel %vm67, %v270, 0
    %v282 = vsel %vm67, %v271, 0
    %284 = vmatprep.subr.mxu0 0.0
    %285 = vmatpush1.msra.mxu0 %v263
    %286 = vmatprep.subr.mxu0 0.0
    %287 = vmatpush1.msra.mxu0 %v264
    %288 = vmatprep.subr.mxu0 0.0
    %289 = vmatpush1.msra.mxu0 %v265
    %290 = vmatprep.subr.mxu0 0.0
    %291 = vmatpush1.msra.mxu0 %v266
    %292 = vmatprep.subr.mxu0 0.0
    %293 = vmatpush1.msra.mxu0 0.0
    %294 = vmatprep.subr.mxu0 0.0
    %295 = vmatpush1.msra.mxu0 0.0
    %296 = vmatprep.subr.mxu0 0.0
    %297 = vmatpush1.msra.mxu0 0.0
    %298 = vmatprep.subr.mxu0 0.0
    %299 = vmatpush1.msra.mxu0 0.0
    %300 = vmatprep.subr.mxu0 0.0
    %301 = vmatpush1.msra.mxu0 0.0
    %302 = vmatprep.subr.mxu0 0.0
    %303 = vmatpush1.msra.mxu0 0.0
    %304 = vmatprep.subr.mxu0 0.0
    %305 = vmatpush1.msra.mxu0 0.0
    %306 = vmatprep.subr.mxu0 0.0
    %307 = vmatpush1.msra.mxu0 0.0
    %308 = vmatprep.subr.mxu0 0.0
    %309 = vmatpush1.msra.mxu0 0.0
    %310 = vmatprep.subr.mxu0 0.0
    %311 = vmatpush1.msra.mxu0 0.0
    %312 = vmatprep.subr.mxu0 0.0
    %313 = vmatpush1.msra.mxu0 0.0
    %314 = vmatprep.subr.mxu0 0.0
    %315 = vmatpush1.msra.mxu0 0.0
    %316 = vmatprep.subr.mxu0 0.0
    %317 = vmatpush1.msra.mxu0 0.0
    %318 = vmatprep.subr.mxu0 0.0
    %319 = vmatpush1.msra.mxu0 0.0
    %320 = vmatprep.subr.mxu0 0.0
    %321 = vmatpush1.msra.mxu0 0.0
    %322 = vmatprep.subr.mxu0 0.0
    %323 = vmatpush1.msra.mxu0 0.0
    %324 = vmatprep.subr.mxu0 0.0
    %325 = vmatpush1.msra.mxu0 0.0
    %326 = vmatprep.subr.mxu0 0.0
    %327 = vmatpush1.msra.mxu0 0.0
    %328 = vmatprep.subr.mxu0 0.0
    %329 = vmatpush1.msra.mxu0 0.0
    %330 = vmatprep.subr.mxu0 0.0
    %331 = vmatpush1.msra.mxu0 0.0
    %332 = vmatprep.subr.mxu0 0.0
    %333 = vmatpush1.msra.mxu0 0.0
    %334 = vmatprep.subr.mxu0 0.0
    %335 = vmatpush1.msra.mxu0 0.0
    %336 = vmatprep.subr.mxu0 0.0
    %337 = vmatpush1.msra.mxu0 0.0
    %338 = vmatprep.subr.mxu0 0.0
    %339 = vmatpush1.msra.mxu0 0.0
    %340 = vmatprep.subr.mxu0 0.0
    %341 = vmatpush1.msra.mxu0 0.0
    %342 = vmatprep.subr.mxu0 0.0
    %343 = vmatpush1.msra.mxu0 0.0
    %344 = vmatprep.subr.mxu0 0.0
    %345 = vmatpush1.msra.mxu0 0.0
    %346 = vmatprep.subr.mxu0 0.0
    %347 = vmatpush1.msra.mxu0 0.0
    %348 = vmatprep.mubr.f32.mxu0 0.0
    %349 = vmatmul.mubr.f32.gmra.mrb[0].mxu0 %v273
    %v350 = vpop.f32.mrb[0].mxu0
    %v351 = vadd.f32 0.0, %v350
    %v352 = vpop.f32.mrb[0].mxu0
    %353 = vmatprep.mubr.f32.mxu0 0.0
    %354 = vmatmul.mubr.f32.gmra.mrb[0].mxu0 %v276
    %v355 = vpop.f32.mrb[0].mxu0
    %v356 = vadd.f32 0.0, %v355
    %v357 = vpop.f32.mrb[0].mxu0
    %358 = vmatprep.mubr.f32.mxu0 0.0
    %359 = vmatmul.mubr.f32.gmra.mrb[0].mxu0 %v279
    %v360 = vpop.f32.mrb[0].mxu0
    %v361 = vadd.f32 0.0, %v360
    %v362 = vpop.f32.mrb[0].mxu0
    %363 = vmatprep.mubr.f32.mxu0 0.0
    %364 = vmatmul.mubr.f32.gmra.mrb[0].mxu0 %v282
    %v365 = vpop.f32.mrb[0].mxu0
    %v366 = vadd.f32 0.0, %v365
    %v367 = vpop.f32.mrb[0].mxu0
    %368 = vdwg.mxu0
    %v369 = vadd.f32 %v244, %v351
    %v370 = vadd.f32 %v249, %v356
    %v371 = vadd.f32 %v254, %v361
    %v372 = vadd.f32 %v259, %v366
    %v373 = vld [vmem:[%s0 + $0x18] sm:$0xff]
    %v374 = vmul.f32 %v373, %v45
    %v375 = vmul.f32 %v373, %v46
    %v376 = vmul.f32 %v373, %v47
    %v377 = vmul.f32 %v373, %v48
    %s378 = scalar_lea.vmem [#allocation2], 96
    %v379 = vld [vmem:[%s378] sm:$0xff]
    %v380 = vld [vmem:[%s378 + $0x8] sm:$0xff]
    %v381 = vld [vmem:[%s378 + $0x10] sm:$0xff]
    %v382 = vld [vmem:[%s378 + $0x18] sm:$0xff]
    %v384 = vsel %vm67, %v379, 0
    %v387 = vsel %vm67, %v380, 0
    %v390 = vsel %vm67, %v381, 0
    %v393 = vsel %vm67, %v382, 0
    %395 = vmatprep.subr.mxu0 0.0
    %396 = vmatpush1.msra.mxu0 %v374
    %397 = vmatprep.subr.mxu0 0.0
    %398 = vmatpush1.msra.mxu0 %v375
    %399 = vmatprep.subr.mxu0 0.0
    %400 = vmatpush1.msra.mxu0 %v376
    %401 = vmatprep.subr.mxu0 0.0
    %402 = vmatpush1.msra.mxu0 %v377
    %403 = vmatprep.subr.mxu0 0.0
    %404 = vmatpush1.msra.mxu0 0.0
    %405 = vmatprep.subr.mxu0 0.0
    %406 = vmatpush1.msra.mxu0 0.0
    %407 = vmatprep.subr.mxu0 0.0
    %408 = vmatpush1.msra.mxu0 0.0
    %409 = vmatprep.subr.mxu0 0.0
    %410 = vmatpush1.msra.mxu0 0.0
    %411 = vmatprep.subr.mxu0 0.0
    %412 = vmatpush1.msra.mxu0 0.0
    %413 = vmatprep.subr.mxu0 0.0
    %414 = vmatpush1.msra.mxu0 0.0
    %415 = vmatprep.subr.mxu0 0.0
    %416 = vmatpush1.msra.mxu0 0.0
    %417 = vmatprep.subr.mxu0 0.0
    %418 = vmatpush1.msra.mxu0 0.0
    %419 = vmatprep.subr.mxu0 0.0
    %420 = vmatpush1.msra.mxu0 0.0
    %421 = vmatprep.subr.mxu0 0.0
    %422 = vmatpush1.msra.mxu0 0.0
    %423 = vmatprep.subr.mxu0 0.0
    %424 = vmatpush1.msra.mxu0 0.0
    %425 = vmatprep.subr.mxu0 0.0
    %426 = vmatpush1.msra.mxu0 0.0
    %427 = vmatprep.subr.mxu0 0.0
    %428 = vmatpush1.msra.mxu0 0.0
    %429 = vmatprep.subr.mxu0 0.0
    %430 = vmatpush1.msra.mxu0 0.0
    %431 = vmatprep.subr.mxu0 0.0
    %432 = vmatpush1.msra.mxu0 0.0
    %433 = vmatprep.subr.mxu0 0.0
    %434 = vmatpush1.msra.mxu0 0.0
    %435 = vmatprep.subr.mxu0 0.0
    %436 = vmatpush1.msra.mxu0 0.0
    %437 = vmatprep.subr.mxu0 0.0
    %438 = vmatpush1.msra.mxu0 0.0
    %439 = vmatprep.subr.mxu0 0.0
    %440 = vmatpush1.msra.mxu0 0.0
    %441 = vmatprep.subr.mxu0 0.0
    %442 = vmatpush1.msra.mxu0 0.0
    %443 = vmatprep.subr.mxu0 0.0
    %444 = vmatpush1.msra.mxu0 0.0
    %445 = vmatprep.subr.mxu0 0.0
    %446 = vmatpush1.msra.mxu0 0.0
    %447 = vmatprep.subr.mxu0 0.0
    %448 = vmatpush1.msra.mxu0 0.0
    %449 = vmatprep.subr.mxu0 0.0
    %450 = vmatpush1.msra.mxu0 0.0
    %451 = vmatprep.subr.mxu0 0.0
    %452 = vmatpush1.msra.mxu0 0.0
    %453 = vmatprep.subr.mxu0 0.0
    %454 = vmatpush1.msra.mxu0 0.0
    %455 = vmatprep.subr.mxu0 0.0
    %456 = vmatpush1.msra.mxu0 0.0
    %457 = vmatprep.subr.mxu0 0.0
    %458 = vmatpush1.msra.mxu0 0.0
    %459 = vmatprep.mubr.f32.mxu0 0.0
    %460 = vmatmul.mubr.f32.gmra.mrb[0].mxu0 %v384
    %v461 = vpop.f32.mrb[0].mxu0
    %v462 = vadd.f32 0.0, %v461
    %v463 = vpop.f32.mrb[0].mxu0
    %464 = vmatprep.mubr.f32.mxu0 0.0
    %465 = vmatmul.mubr.f32.gmra.mrb[0].mxu0 %v387
    %v466 = vpop.f32.mrb[0].mxu0
    %v467 = vadd.f32 0.0, %v466
    %v468 = vpop.f32.mrb[0].mxu0
    %469 = vmatprep.mubr.f32.mxu0 0.0
    %470 = vmatmul.mubr.f32.gmra.mrb[0].mxu0 %v390
    %v471 = vpop.f32.mrb[0].mxu0
    %v472 = vadd.f32 0.0, %v471
    %v473 = vpop.f32.mrb[0].mxu0
    %474 = vmatprep.mubr.f32.mxu0 0.0
    %475 = vmatmul.mubr.f32.gmra.mrb[0].mxu0 %v393
    %v476 = vpop.f32.mrb[0].mxu0
    %v477 = vadd.f32 0.0, %v476
    %v478 = vpop.f32.mrb[0].mxu0
    %479 = vdwg.mxu0
    %v480 = vadd.f32 %v369, %v462
    %v481 = vadd.f32 %v370, %v467
    %v482 = vadd.f32 %v371, %v472
    %v483 = vadd.f32 %v372, %v477
    %v484 = vld [vmem:[%s0 + $0x20] sm:$0xff]
    %v485 = vld [vmem:[%s1 + $0x20] sm:$0xff]
    %v486 = vld [vmem:[%s1 + $0x28] sm:$0xff]
    %v487 = vld [vmem:[%s1 + $0x30] sm:$0xff]
    %v488 = vld [vmem:[%s1 + $0x38] sm:$0xff]
    %v489 = vmul.f32 %v484, %v485
    %v490 = vmul.f32 %v484, %v486
    %v491 = vmul.f32 %v484, %v487
    %v492 = vmul.f32 %v484, %v488
    %s493 = scalar_lea.vmem [#allocation2], 128
    %v494 = vld [vmem:[%s493] sm:$0xff]
    %v495 = vld [vmem:[%s493 + $0x8] sm:$0xff]
    %v496 = vld [vmem:[%s493 + $0x10] sm:$0xff]
    %v497 = vld [vmem:[%s493 + $0x18] sm:$0xff]
    %v499 = vsel %vm67, %v494, 0
    %v502 = vsel %vm67, %v495, 0
    %v505 = vsel %vm67, %v496, 0
    %v508 = vsel %vm67, %v497, 0
    %510 = vmatprep.subr.mxu0 0.0
    %511 = vmatpush1.msra.mxu0 %v489
    %512 = vmatprep.subr.mxu0 0.0
    %513 = vmatpush1.msra.mxu0 %v490
    %514 = vmatprep.subr.mxu0 0.0
    %515 = vmatpush1.msra.mxu0 %v491
    %516 = vmatprep.subr.mxu0 0.0
    %517 = vmatpush1.msra.mxu0 %v492
    %518 = vmatprep.subr.mxu0 0.0
    %519 = vmatpush1.msra.mxu0 0.0
    %520 = vmatprep.subr.mxu0 0.0
    %521 = vmatpush1.msra.mxu0 0.0
    %522 = vmatprep.subr.mxu0 0.0
    %523 = vmatpush1.msra.mxu0 0.0
    %524 = vmatprep.subr.mxu0 0.0
    %525 = vmatpush1.msra.mxu0 0.0
    %526 = vmatprep.subr.mxu0 0.0
    %527 = vmatpush1.msra.mxu0 0.0
    %528 = vmatprep.subr.mxu0 0.0
    %529 = vmatpush1.msra.mxu0 0.0
    %530 = vmatprep.subr.mxu0 0.0
    %531 = vmatpush1.msra.mxu0 0.0
    %532 = vmatprep.subr.mxu0 0.0
    %533 = vmatpush1.msra.mxu0 0.0
    %534 = vmatprep.subr.mxu0 0.0
    %535 = vmatpush1.msra.mxu0 0.0
    %536 = vmatprep.subr.mxu0 0.0
    %537 = vmatpush1.msra.mxu0 0.0
    %538 = vmatprep.subr.mxu0 0.0
    %539 = vmatpush1.msra.mxu0 0.0
    %540 = vmatprep.subr.mxu0 0.0
    %541 = vmatpush1.msra.mxu0 0.0
    %542 = vmatprep.subr.mxu0 0.0
    %543 = vmatpush1.msra.mxu0 0.0
    %544 = vmatprep.subr.mxu0 0.0
    %545 = vmatpush1.msra.mxu0 0.0
    %546 = vmatprep.subr.mxu0 0.0
    %547 = vmatpush1.msra.mxu0 0.0
    %548 = vmatprep.subr.mxu0 0.0
    %549 = vmatpush1.msra.mxu0 0.0
    %550 = vmatprep.subr.mxu0 0.0
    %551 = vmatpush1.msra.mxu0 0.0
    %552 = vmatprep.subr.mxu0 0.0
    %553 = vmatpush1.msra.mxu0 0.0
    %554 = vmatprep.subr.mxu0 0.0
    %555 = vmatpush1.msra.mxu0 0.0
    %556 = vmatprep.subr.mxu0 0.0
    %557 = vmatpush1.msra.mxu0 0.0
    %558 = vmatprep.subr.mxu0 0.0
    %559 = vmatpush1.msra.mxu0 0.0
    %560 = vmatprep.subr.mxu0 0.0
    %561 = vmatpush1.msra.mxu0 0.0
    %562 = vmatprep.subr.mxu0 0.0
    %563 = vmatpush1.msra.mxu0 0.0
    %564 = vmatprep.subr.mxu0 0.0
    %565 = vmatpush1.msra.mxu0 0.0
    %566 = vmatprep.subr.mxu0 0.0
    %567 = vmatpush1.msra.mxu0 0.0
    %568 = vmatprep.subr.mxu0 0.0
    %569 = vmatpush1.msra.mxu0 0.0
    %570 = vmatprep.subr.mxu0 0.0
    %571 = vmatpush1.msra.mxu0 0.0
    %572 = vmatprep.subr.mxu0 0.0
    %573 = vmatpush1.msra.mxu0 0.0
    %574 = vmatprep.mubr.f32.mxu0 0.0
    %575 = vmatmul.mubr.f32.gmra.mrb[0].mxu0 %v499
    %v576 = vpop.f32.mrb[0].mxu0
    %v577 = vadd.f32 0.0, %v576
    %v578 = vpop.f32.mrb[0].mxu0
    %579 = vmatprep.mubr.f32.mxu0 0.0
    %580 = vmatmul.mubr.f32.gmra.mrb[0].mxu0 %v502
    %v581 = vpop.f32.mrb[0].mxu0
    %v582 = vadd.f32 0.0, %v581
    %v583 = vpop.f32.mrb[0].mxu0
    %584 = vmatprep.mubr.f32.mxu0 0.0
    %585 = vmatmul.mubr.f32.gmra.mrb[0].mxu0 %v505
    %v586 = vpop.f32.mrb[0].mxu0
    %v587 = vadd.f32 0.0, %v586
    %v588 = vpop.f32.mrb[0].mxu0
    %589 = vmatprep.mubr.f32.mxu0 0.0
    %590 = vmatmul.mubr.f32.gmra.mrb[0].mxu0 %v508
    %v591 = vpop.f32.mrb[0].mxu0
    %v592 = vadd.f32 0.0, %v591
    %v593 = vpop.f32.mrb[0].mxu0
    %594 = vdwg.mxu0
    %v595 = vadd.f32 %v480, %v577
    %v596 = vadd.f32 %v481, %v582
    %v597 = vadd.f32 %v482, %v587
    %v598 = vadd.f32 %v483, %v592
    %v599 = vld [vmem:[%s0 + $0x28] sm:$0xff]
    %v600 = vmul.f32 %v599, %v485
    %v601 = vmul.f32 %v599, %v486
    %v602 = vmul.f32 %v599, %v487
    %v603 = vmul.f32 %v599, %v488
    %s604 = scalar_lea.vmem [#allocation2], 160
    %v605 = vld [vmem:[%s604] sm:$0xff]
    %v606 = vld [vmem:[%s604 + $0x8] sm:$0xff]
    %v607 = vld [vmem:[%s604 + $0x10] sm:$0xff]
    %v608 = vld [vmem:[%s604 + $0x18] sm:$0xff]
    %v610 = vsel %vm67, %v605, 0
    %v613 = vsel %vm67, %v606, 0
    %v616 = vsel %vm67, %v607, 0
    %v619 = vsel %vm67, %v608, 0
    %621 = vmatprep.subr.mxu0 0.0
    %622 = vmatpush1.msra.mxu0 %v600
    %623 = vmatprep.subr.mxu0 0.0
    %624 = vmatpush1.msra.mxu0 %v601
    %625 = vmatprep.subr.mxu0 0.0
    %626 = vmatpush1.msra.mxu0 %v602
    %627 = vmatprep.subr.mxu0 0.0
    %628 = vmatpush1.msra.mxu0 %v603
    %629 = vmatprep.subr.mxu0 0.0
    %630 = vmatpush1.msra.mxu0 0.0
    %631 = vmatprep.subr.mxu0 0.0
    %632 = vmatpush1.msra.mxu0 0.0
    %633 = vmatprep.subr.mxu0 0.0
    %634 = vmatpush1.msra.mxu0 0.0
    %635 = vmatprep.subr.mxu0 0.0
    %636 = vmatpush1.msra.mxu0 0.0
    %637 = vmatprep.subr.mxu0 0.0
    %638 = vmatpush1.msra.mxu0 0.0
    %639 = vmatprep.subr.mxu0 0.0
    %640 = vmatpush1.msra.mxu0 0.0
    %641 = vmatprep.subr.mxu0 0.0
    %642 = vmatpush1.msra.mxu0 0.0
    %643 = vmatprep.subr.mxu0 0.0
    %644 = vmatpush1.msra.mxu0 0.0
    %645 = vmatprep.subr.mxu0 0.0
    %646 = vmatpush1.msra.mxu0 0.0
    %647 = vmatprep.subr.mxu0 0.0
    %648 = vmatpush1.msra.mxu0 0.0
    %649 = vmatprep.subr.mxu0 0.0
    %650 = vmatpush1.msra.mxu0 0.0
    %651 = vmatprep.subr.mxu0 0.0
    %652 = vmatpush1.msra.mxu0 0.0
    %653 = vmatprep.subr.mxu0 0.0
    %654 = vmatpush1.msra.mxu0 0.0
    %655 = vmatprep.subr.mxu0 0.0
    %656 = vmatpush1.msra.mxu0 0.0
    %657 = vmatprep.subr.mxu0 0.0
    %658 = vmatpush1.msra.mxu0 0.0
    %659 = vmatprep.subr.mxu0 0.0
    %660 = vmatpush1.msra.mxu0 0.0
    %661 = vmatprep.subr.mxu0 0.0
    %662 = vmatpush1.msra.mxu0 0.0
    %663 = vmatprep.subr.mxu0 0.0
    %664 = vmatpush1.msra.mxu0 0.0
    %665 = vmatprep.subr.mxu0 0.0
    %666 = vmatpush1.msra.mxu0 0.0
    %667 = vmatprep.subr.mxu0 0.0
    %668 = vmatpush1.msra.mxu0 0.0
    %669 = vmatprep.subr.mxu0 0.0
    %670 = vmatpush1.msra.mxu0 0.0
    %671 = vmatprep.subr.mxu0 0.0
    %672 = vmatpush1.msra.mxu0 0.0
    %673 = vmatprep.subr.mxu0 0.0
    %674 = vmatpush1.msra.mxu0 0.0
    %675 = vmatprep.subr.mxu0 0.0
    %676 = vmatpush1.msra.mxu0 0.0
    %677 = vmatprep.subr.mxu0 0.0
    %678 = vmatpush1.msra.mxu0 0.0
    %679 = vmatprep.subr.mxu0 0.0
    %680 = vmatpush1.msra.mxu0 0.0
    %681 = vmatprep.subr.mxu0 0.0
    %682 = vmatpush1.msra.mxu0 0.0
    %683 = vmatprep.subr.mxu0 0.0
    %684 = vmatpush1.msra.mxu0 0.0
    %685 = vmatprep.mubr.f32.mxu0 0.0
    %686 = vmatmul.mubr.f32.gmra.mrb[0].mxu0 %v610
    %v687 = vpop.f32.mrb[0].mxu0
    %v688 = vadd.f32 0.0, %v687
    %v689 = vpop.f32.mrb[0].mxu0
    %690 = vmatprep.mubr.f32.mxu0 0.0
    %691 = vmatmul.mubr.f32.gmra.mrb[0].mxu0 %v613
    %v692 = vpop.f32.mrb[0].mxu0
    %v693 = vadd.f32 0.0, %v692
    %v694 = vpop.f32.mrb[0].mxu0
    %695 = vmatprep.mubr.f32.mxu0 0.0
    %696 = vmatmul.mubr.f32.gmra.mrb[0].mxu0 %v616
    %v697 = vpop.f32.mrb[0].mxu0
    %v698 = vadd.f32 0.0, %v697
    %v699 = vpop.f32.mrb[0].mxu0
    %700 = vmatprep.mubr.f32.mxu0 0.0
    %701 = vmatmul.mubr.f32.gmra.mrb[0].mxu0 %v619
    %v702 = vpop.f32.mrb[0].mxu0
    %v703 = vadd.f32 0.0, %v702
    %v704 = vpop.f32.mrb[0].mxu0
    %705 = vdwg.mxu0
    %v706 = vadd.f32 %v595, %v688
    %v707 = vadd.f32 %v596, %v693
    %v708 = vadd.f32 %v597, %v698
    %v709 = vadd.f32 %v598, %v703
    %v710 = vld [vmem:[%s0 + $0x30] sm:$0xff]
    %v711 = vmul.f32 %v710, %v485
    %v712 = vmul.f32 %v710, %v486
    %v713 = vmul.f32 %v710, %v487
    %v714 = vmul.f32 %v710, %v488
    %s715 = scalar_lea.vmem [#allocation2], 192
    %v716 = vld [vmem:[%s715] sm:$0xff]
    %v717 = vld [vmem:[%s715 + $0x8] sm:$0xff]
    %v718 = vld [vmem:[%s715 + $0x10] sm:$0xff]
    %v719 = vld [vmem:[%s715 + $0x18] sm:$0xff]
    %v721 = vsel %vm67, %v716, 0
    %v724 = vsel %vm67, %v717, 0
    %v727 = vsel %vm67, %v718, 0
    %v730 = vsel %vm67, %v719, 0
    %732 = vmatprep.subr.mxu0 0.0
    %733 = vmatpush1.msra.mxu0 %v711
    %734 = vmatprep.subr.mxu0 0.0
    %735 = vmatpush1.msra.mxu0 %v712
    %736 = vmatprep.subr.mxu0 0.0
    %737 = vmatpush1.msra.mxu0 %v713
    %738 = vmatprep.subr.mxu0 0.0
    %739 = vmatpush1.msra.mxu0 %v714
    %740 = vmatprep.subr.mxu0 0.0
    %741 = vmatpush1.msra.mxu0 0.0
    %742 = vmatprep.subr.mxu0 0.0
    %743 = vmatpush1.msra.mxu0 0.0
    %744 = vmatprep.subr.mxu0 0.0
    %745 = vmatpush1.msra.mxu0 0.0
    %746 = vmatprep.subr.mxu0 0.0
    %747 = vmatpush1.msra.mxu0 0.0
    %748 = vmatprep.subr.mxu0 0.0
    %749 = vmatpush1.msra.mxu0 0.0
    %750 = vmatprep.subr.mxu0 0.0
    %751 = vmatpush1.msra.mxu0 0.0
    %752 = vmatprep.subr.mxu0 0.0
    %753 = vmatpush1.msra.mxu0 0.0
    %754 = vmatprep.subr.mxu0 0.0
    %755 = vmatpush1.msra.mxu0 0.0
    %756 = vmatprep.subr.mxu0 0.0
    %757 = vmatpush1.msra.mxu0 0.0
    %758 = vmatprep.subr.mxu0 0.0
    %759 = vmatpush1.msra.mxu0 0.0
    %760 = vmatprep.subr.mxu0 0.0
    %761 = vmatpush1.msra.mxu0 0.0
    %762 = vmatprep.subr.mxu0 0.0
    %763 = vmatpush1.msra.mxu0 0.0
    %764 = vmatprep.subr.mxu0 0.0
    %765 = vmatpush1.msra.mxu0 0.0
    %766 = vmatprep.subr.mxu0 0.0
    %767 = vmatpush1.msra.mxu0 0.0
    %768 = vmatprep.subr.mxu0 0.0
    %769 = vmatpush1.msra.mxu0 0.0
    %770 = vmatprep.subr.mxu0 0.0
    %771 = vmatpush1.msra.mxu0 0.0
    %772 = vmatprep.subr.mxu0 0.0
    %773 = vmatpush1.msra.mxu0 0.0
    %774 = vmatprep.subr.mxu0 0.0
    %775 = vmatpush1.msra.mxu0 0.0
    %776 = vmatprep.subr.mxu0 0.0
    %777 = vmatpush1.msra.mxu0 0.0
    %778 = vmatprep.subr.mxu0 0.0
    %779 = vmatpush1.msra.mxu0 0.0
    %780 = vmatprep.subr.mxu0 0.0
    %781 = vmatpush1.msra.mxu0 0.0
    %782 = vmatprep.subr.mxu0 0.0
    %783 = vmatpush1.msra.mxu0 0.0
    %784 = vmatprep.subr.mxu0 0.0
    %785 = vmatpush1.msra.mxu0 0.0
    %786 = vmatprep.subr.mxu0 0.0
    %787 = vmatpush1.msra.mxu0 0.0
    %788 = vmatprep.subr.mxu0 0.0
    %789 = vmatpush1.msra.mxu0 0.0
    %790 = vmatprep.subr.mxu0 0.0
    %791 = vmatpush1.msra.mxu0 0.0
    %792 = vmatprep.subr.mxu0 0.0
    %793 = vmatpush1.msra.mxu0 0.0
    %794 = vmatprep.subr.mxu0 0.0
    %795 = vmatpush1.msra.mxu0 0.0
    %796 = vmatprep.mubr.f32.mxu0 0.0
    %797 = vmatmul.mubr.f32.gmra.mrb[0].mxu0 %v721
    %v798 = vpop.f32.mrb[0].mxu0
    %v799 = vadd.f32 0.0, %v798
    %v800 = vpop.f32.mrb[0].mxu0
    %801 = vmatprep.mubr.f32.mxu0 0.0
    %802 = vmatmul.mubr.f32.gmra.mrb[0].mxu0 %v724
    %v803 = vpop.f32.mrb[0].mxu0
    %v804 = vadd.f32 0.0, %v803
    %v805 = vpop.f32.mrb[0].mxu0
    %806 = vmatprep.mubr.f32.mxu0 0.0
    %807 = vmatmul.mubr.f32.gmra.mrb[0].mxu0 %v727
    %v808 = vpop.f32.mrb[0].mxu0
    %v809 = vadd.f32 0.0, %v808
    %v810 = vpop.f32.mrb[0].mxu0
    %811 = vmatprep.mubr.f32.mxu0 0.0
    %812 = vmatmul.mubr.f32.gmra.mrb[0].mxu0 %v730
    %v813 = vpop.f32.mrb[0].mxu0
    %v814 = vadd.f32 0.0, %v813
    %v815 = vpop.f32.mrb[0].mxu0
    %816 = vdwg.mxu0
    %v817 = vadd.f32 %v706, %v799
    %v818 = vadd.f32 %v707, %v804
    %v819 = vadd.f32 %v708, %v809
    %v820 = vadd.f32 %v709, %v814
    %v821 = vld [vmem:[%s0 + $0x38] sm:$0xff]
    %v822 = vmul.f32 %v821, %v485
    %v823 = vmul.f32 %v821, %v486
    %v824 = vmul.f32 %v821, %v487
    %v825 = vmul.f32 %v821, %v488
    %s826 = scalar_lea.vmem [#allocation2], 224
    %v827 = vld [vmem:[%s826] sm:$0xff]
    %v828 = vld [vmem:[%s826 + $0x8] sm:$0xff]
    %v829 = vld [vmem:[%s826 + $0x10] sm:$0xff]
    %v830 = vld [vmem:[%s826 + $0x18] sm:$0xff]
    %v832 = vsel %vm67, %v827, 0
    %v835 = vsel %vm67, %v828, 0
    %v838 = vsel %vm67, %v829, 0
    %v841 = vsel %vm67, %v830, 0
    %843 = vmatprep.subr.mxu0 0.0
    %844 = vmatpush1.msra.mxu0 %v822
    %845 = vmatprep.subr.mxu0 0.0
    %846 = vmatpush1.msra.mxu0 %v823
    %847 = vmatprep.subr.mxu0 0.0
    %848 = vmatpush1.msra.mxu0 %v824
    %849 = vmatprep.subr.mxu0 0.0
    %850 = vmatpush1.msra.mxu0 %v825
    %851 = vmatprep.subr.mxu0 0.0
    %852 = vmatpush1.msra.mxu0 0.0
    %853 = vmatprep.subr.mxu0 0.0
    %854 = vmatpush1.msra.mxu0 0.0
    %855 = vmatprep.subr.mxu0 0.0
    %856 = vmatpush1.msra.mxu0 0.0
    %857 = vmatprep.subr.mxu0 0.0
    %858 = vmatpush1.msra.mxu0 0.0
    %859 = vmatprep.subr.mxu0 0.0
    %860 = vmatpush1.msra.mxu0 0.0
    %861 = vmatprep.subr.mxu0 0.0
    %862 = vmatpush1.msra.mxu0 0.0
    %863 = vmatprep.subr.mxu0 0.0
    %864 = vmatpush1.msra.mxu0 0.0
    %865 = vmatprep.subr.mxu0 0.0
    %866 = vmatpush1.msra.mxu0 0.0
    %867 = vmatprep.subr.mxu0 0.0
    %868 = vmatpush1.msra.mxu0 0.0
    %869 = vmatprep.subr.mxu0 0.0
    %870 = vmatpush1.msra.mxu0 0.0
    %871 = vmatprep.subr.mxu0 0.0
    %872 = vmatpush1.msra.mxu0 0.0
    %873 = vmatprep.subr.mxu0 0.0
    %874 = vmatpush1.msra.mxu0 0.0
    %875 = vmatprep.subr.mxu0 0.0
    %876 = vmatpush1.msra.mxu0 0.0
    %877 = vmatprep.subr.mxu0 0.0
    %878 = vmatpush1.msra.mxu0 0.0
    %879 = vmatprep.subr.mxu0 0.0
    %880 = vmatpush1.msra.mxu0 0.0
    %881 = vmatprep.subr.mxu0 0.0
    %882 = vmatpush1.msra.mxu0 0.0
    %883 = vmatprep.subr.mxu0 0.0
    %884 = vmatpush1.msra.mxu0 0.0
    %885 = vmatprep.subr.mxu0 0.0
    %886 = vmatpush1.msra.mxu0 0.0
    %887 = vmatprep.subr.mxu0 0.0
    %888 = vmatpush1.msra.mxu0 0.0
    %889 = vmatprep.subr.mxu0 0.0
    %890 = vmatpush1.msra.mxu0 0.0
    %891 = vmatprep.subr.mxu0 0.0
    %892 = vmatpush1.msra.mxu0 0.0
    %893 = vmatprep.subr.mxu0 0.0
    %894 = vmatpush1.msra.mxu0 0.0
    %895 = vmatprep.subr.mxu0 0.0
    %896 = vmatpush1.msra.mxu0 0.0
    %897 = vmatprep.subr.mxu0 0.0
    %898 = vmatpush1.msra.mxu0 0.0
    %899 = vmatprep.subr.mxu0 0.0
    %900 = vmatpush1.msra.mxu0 0.0
    %901 = vmatprep.subr.mxu0 0.0
    %902 = vmatpush1.msra.mxu0 0.0
    %903 = vmatprep.subr.mxu0 0.0
    %904 = vmatpush1.msra.mxu0 0.0
    %905 = vmatprep.subr.mxu0 0.0
    %906 = vmatpush1.msra.mxu0 0.0
    %907 = vmatprep.mubr.f32.mxu0 0.0
    %908 = vmatmul.mubr.f32.gmra.mrb[0].mxu0 %v832
    %v909 = vpop.f32.mrb[0].mxu0
    %v910 = vadd.f32 0.0, %v909
    %v911 = vpop.f32.mrb[0].mxu0
    %912 = vmatprep.mubr.f32.mxu0 0.0
    %913 = vmatmul.mubr.f32.gmra.mrb[0].mxu0 %v835
    %v914 = vpop.f32.mrb[0].mxu0
    %v915 = vadd.f32 0.0, %v914
    %v916 = vpop.f32.mrb[0].mxu0
    %917 = vmatprep.mubr.f32.mxu0 0.0
    %918 = vmatmul.mubr.f32.gmra.mrb[0].mxu0 %v838
    %v919 = vpop.f32.mrb[0].mxu0
    %v920 = vadd.f32 0.0, %v919
    %v921 = vpop.f32.mrb[0].mxu0
    %922 = vmatprep.mubr.f32.mxu0 0.0
    %923 = vmatmul.mubr.f32.gmra.mrb[0].mxu0 %v841
    %v924 = vpop.f32.mrb[0].mxu0
    %v925 = vadd.f32 0.0, %v924
    %v926 = vpop.f32.mrb[0].mxu0
    %927 = vdwg.mxu0
    %v928 = vadd.f32 %v817, %v910
    %v929 = vadd.f32 %v818, %v915
    %v930 = vadd.f32 %v819, %v920
    %v931 = vadd.f32 %v820, %v925
    %v932 = vld [vmem:[%s3] sm:$0xff]
    %v933 = vld [vmem:[%s3 + $0x8] sm:$0xff]
    %v934 = vld [vmem:[%s3 + $0x10] sm:$0xff]
    %v935 = vld [vmem:[%s3 + $0x18] sm:$0xff]
    %937 = vset.pattern.permute.xlu0 0
    %938 = vperm.xlu0 %937, %v932
    %v939 = vpop.permute.xlu0 %938
    %942 = vset.pattern.permute.xlu0 0
    %943 = vperm.xlu0 %942, %v933
    %v944 = vpop.permute.xlu0 %943
    %947 = vset.pattern.permute.xlu0 0
    %948 = vperm.xlu0 %947, %v934
    %v949 = vpop.permute.xlu0 %948
    %952 = vset.pattern.permute.xlu0 0
    %953 = vperm.xlu0 %952, %v935
    %v954 = vpop.permute.xlu0 %953
    %v956 = vadd.f32 %v928, %v939
    %v957 = vadd.f32 %v929, %v944
    %v958 = vadd.f32 %v930, %v949
    %v959 = vadd.f32 %v931, %v954
    %v960 = vadd.f32 %v956, %v957
    %v961 = vadd.f32 %v960, %v958
    %v962 = vadd.f32 %v961, %v959
    %v963 = vrot.slane %v962, 4
    %v964 = vadd.f32 %v962, %v963
    %v965 = vrot.slane %v964, 2
    %v966 = vadd.f32 %v964, %v965
    %v967 = vrot.slane %v966, 1
    %v968 = vadd.f32 %v966, %v967
    %v969 = vrcp.pop 32.0
    %v970 = vmul.f32 %v968, %v969
    %v971 = vsub.f32 %v956, %v970
    %v972 = vsub.f32 %v957, %v970
    %v973 = vsub.f32 %v958, %v970
    %v974 = vsub.f32 %v959, %v970
    %v975 = vmul.f32 %v971, %v971
    %v976 = vmul.f32 %v972, %v972
    %v977 = vmul.f32 %v973, %v973
    %v978 = vmul.f32 %v974, %v974
    %v979 = vadd.f32 %v975, %v976
    %v980 = vadd.f32 %v979, %v977
    %v981 = vadd.f32 %v980, %v978
    %v982 = vrot.slane %v981, 4
    %v983 = vadd.f32 %v981, %v982
    %v984 = vrot.slane %v983, 2
    %v985 = vadd.f32 %v983, %v984
    %v986 = vrot.slane %v985, 1
    %v987 = vadd.f32 %v985, %v986
    %v988 = vmul.f32 %v987, %v969
    %v989 = vadd.f32 %v988, 1e-05
    %v990 = vrsqrt.pop %v989
    %v991 = vmul.f32 %v971, %v990
    %v992 = vmul.f32 %v972, %v990
    %v993 = vmul.f32 %v973, %v990
    %v994 = vmul.f32 %v974, %v990
    %v995 = vld [vmem:[%s4] sm:$0xff]
    %v996 = vld [vmem:[%s4 + $0x8] sm:$0xff]
    %v997 = vld [vmem:[%s4 + $0x10] sm:$0xff]
    %v998 = vld [vmem:[%s4 + $0x18] sm:$0xff]
    %1000 = vset.pattern.permute.xlu0 0
    %1001 = vperm.xlu0 %1000, %v995
    %v1002 = vpop.permute.xlu0 %1001
    %1005 = vset.pattern.permute.xlu0 0
    %1006 = vperm.xlu0 %1005, %v996
    %v1007 = vpop.permute.xlu0 %1006
    %1010 = vset.pattern.permute.xlu0 0
    %1011 = vperm.xlu0 %1010, %v997
    %v1012 = vpop.permute.xlu0 %1011
    %1015 = vset.pattern.permute.xlu0 0
    %1016 = vperm.xlu0 %1015, %v998
    %v1017 = vpop.permute.xlu0 %1016
    %v1019 = vmul.f32 %v991, %v1002
    %v1020 = vmul.f32 %v992, %v1007
    %v1021 = vmul.f32 %v993, %v1012
    %v1022 = vmul.f32 %v994, %v1017
    %v1023 = vld [vmem:[%s5] sm:$0xff]
    %v1024 = vld [vmem:[%s5 + $0x8] sm:$0xff]
    %v1025 = vld [vmem:[%s5 + $0x10] sm:$0xff]
    %v1026 = vld [vmem:[%s5 + $0x18] sm:$0xff]
    %1028 = vset.pattern.permute.xlu0 0
    %1029 = vperm.xlu0 %1028, %v1023
    %v1030 = vpop.permute.xlu0 %1029
    %1033 = vset.pattern.permute.xlu0 0
    %1034 = vperm.xlu0 %1033, %v1024
    %v1035 = vpop.permute.xlu0 %1034
    %1038 = vset.pattern.permute.xlu0 0
    %1039 = vperm.xlu0 %1038, %v1025
    %v1040 = vpop.permute.xlu0 %1039
    %1043 = vset.pattern.permute.xlu0 0
    %1044 = vperm.xlu0 %1043, %v1026
    %v1045 = vpop.permute.xlu0 %1044
    %v1047 = vadd.f32 %v1019, %v1030
    %v1048 = vadd.f32 %v1020, %v1035
    %v1049 = vadd.f32 %v1021, %v1040
    %v1050 = vadd.f32 %v1022, %v1045
    %v1051 = vmax.f32 %v1047, 0.0
    %v1052 = vmax.f32 %v1048, 0.0
    %v1053 = vmax.f32 %v1049, 0.0
    %v1054 = vmax.f32 %v1050, 0.0
    %v1055 = vld [vmem:[%s6] sm:$0xff]
    %v1056 = vld [vmem:[%s7] sm:$0xff]
    %1058 = vset.pattern.permute.xlu0 0
    %1059 = vperm.xlu0 %1058, %v1056
    %v1060 = vpop.permute.xlu0 %1059
    %v1063 = vsel %vm67, %v1055, 0
    %1065 = vmatprep.subr.mxu0 0.0
    %1066 = vmatpush1.msra.mxu0 %v1051
    %1067 = vmatprep.subr.mxu0 0.0
    %1068 = vmatpush1.msra.mxu0 %v1052
    %1069 = vmatprep.subr.mxu0 0.0
    %1070 = vmatpush1.msra.mxu0 %v1053
    %1071 = vmatprep.subr.mxu0 0.0
    %1072 = vmatpush1.msra.mxu0 %v1054
    %1073 = vmatprep.subr.mxu0 0.0
    %1074 = vmatpush1.msra.mxu0 0.0
    %1075 = vmatprep.subr.mxu0 0.0
    %1076 = vmatpush1.msra.mxu0 0.0
    %1077 = vmatprep.subr.mxu0 0.0
    %1078 = vmatpush1.msra.mxu0 0.0
    %1079 = vmatprep.subr.mxu0 0.0
    %1080 = vmatpush1.msra.mxu0 0.0
    %1081 = vmatprep.subr.mxu0 0.0
    %1082 = vmatpush1.msra.mxu0 0.0
    %1083 = vmatprep.subr.mxu0 0.0
    %1084 = vmatpush1.msra.mxu0 0.0
    %1085 = vmatprep.subr.mxu0 0.0
    %1086 = vmatpush1.msra.mxu0 0.0
    %1087 = vmatprep.subr.mxu0 0.0
    %1088 = vmatpush1.msra.mxu0 0.0
    %1089 = vmatprep.subr.mxu0 0.0
    %1090 = vmatpush1.msra.mxu0 0.0
    %1091 = vmatprep.subr.mxu0 0.0
    %1092 = vmatpush1.msra.mxu0 0.0
    %1093 = vmatprep.subr.mxu0 0.0
    %1094 = vmatpush1.msra.mxu0 0.0
    %1095 = vmatprep.subr.mxu0 0.0
    %1096 = vmatpush1.msra.mxu0 0.0
    %1097 = vmatprep.subr.mxu0 0.0
    %1098 = vmatpush1.msra.mxu0 0.0
    %1099 = vmatprep.subr.mxu0 0.0
    %1100 = vmatpush1.msra.mxu0 0.0
    %1101 = vmatprep.subr.mxu0 0.0
    %1102 = vmatpush1.msra.mxu0 0.0
    %1103 = vmatprep.subr.mxu0 0.0
    %1104 = vmatpush1.msra.mxu0 0.0
    %1105 = vmatprep.subr.mxu0 0.0
    %1106 = vmatpush1.msra.mxu0 0.0
    %1107 = vmatprep.subr.mxu0 0.0
    %1108 = vmatpush1.msra.mxu0 0.0
    %1109 = vmatprep.subr.mxu0 0.0
    %1110 = vmatpush1.msra.mxu0 0.0
    %1111 = vmatprep.subr.mxu0 0.0
    %1112 = vmatpush1.msra.mxu0 0.0
    %1113 = vmatprep.subr.mxu0 0.0
    %1114 = vmatpush1.msra.mxu0 0.0
    %1115 = vmatprep.subr.mxu0 0.0
    %1116 = vmatpush1.msra.mxu0 0.0
    %1117 = vmatprep.subr.mxu0 0.0
    %1118 = vmatpush1.msra.mxu0 0.0
    %1119 = vmatprep.subr.mxu0 0.0
    %1120 = vmatpush1.msra.mxu0 0.0
    %1121 = vmatprep.subr.mxu0 0.0
    %1122 = vmatpush1.msra.mxu0 0.0
    %1123 = vmatprep.subr.mxu0 0.0
    %1124 = vmatpush1.msra.mxu0 0.0
    %1125 = vmatprep.subr.mxu0 0.0
    %1126 = vmatpush1.msra.mxu0 0.0
    %1127 = vmatprep.subr.mxu0 0.0
    %1128 = vmatpush1.msra.mxu0 0.0
    %1129 = vmatprep.mubr.f32.mxu0 0.0
    %1130 = vmatmul.mubr.f32.gmra.mrb[0].mxu0 %v1063
    %v1131 = vpop.f32.mrb[0].mxu0
    %v1132 = vadd.f32 %v1060, %v1131
    %v1133 = vpop.f32.mrb[0].mxu0
    %1134 = vdwg.mxu0
    %1135 = vst [vmem:[#allocation5] sm:$0xff] %v1132
    // Predicated region
    $region38: #{tpu_custom_call.1} parent=1 // pred_check
      _
    $region39: #{tpu_custom_call.1} parent=1 // pred_check_branch
      %1137 = sbr.rel (0) target = $region41
    $region40: #{tpu_custom_call.1} parent=1 // pred_region
      %s1139 = ssub.s32 128, 128
      %1140 = vsyncadd [#allocation4], %s1139
      %s1142 = sshll.u32 [#allocation5], 4
      %s1143 = int_to_ptr.vmem [resolvable:$true] %s1142
      %1145 = dma.vmem_to_hbm [thread:$0]  %s1143, 128, %s8, [#allocation4]
    $region41: #{tpu_custom_call.1} parent=1 // pred_fallthru
      _
    // Predicated region
    $region42: #{tpu_custom_call.1} parent=1 // pred_check
      _
    $region43: #{tpu_custom_call.1} parent=1 // pred_check_branch
      %1147 = sbr.rel (0) target = $region45
    $region44: #{tpu_custom_call.1} parent=1 // pred_region
      %1148 = dma.done [#allocation4], 128
    $region45: #{tpu_custom_call.1} parent=1 // pred_fallthru
      _
    %1149 = vsyncpa [#allocation3], 1
    %1150 = vsyncpa [#allocation4], 1

</llo_original>
